<compile_context>
chip_gen: v7x
topology: tpu7x:2x2x1
jax: 0.10.0
libtpu: 0.0.40
codegen_flags: <defaults>
</compile_context>

<pallas_src>
import math

import jax
import jax.numpy as jnp
from jax import lax
from jax.experimental import pallas as pl
from jax.experimental.pallas import tpu as pltpu

# ----------------------------- configuration --------------------------------
NUM_EXPERTS = 5      # routing logic hard-codes 5 expert branches
NUM_TASKS = 3
IN_CHAN = 4
OUT_CHAN = 8
KSIZE = 5
N = 2                # batch
L = 16               # sequence length
EPS = 1e-5           # InstanceNorm1d default eps
CO_PAD = 128         # lane-dense padded output-channel width


# ------------------------------- Pallas kernel ------------------------------
def mode_conv_kernel(cols_ref, w_ref, gb_ref, o_ref):
    # cols_ref: (N, L, K*Ci)     im2col'd causal input columns
    # w_ref:    (N, K*Ci, Cop)   routed per-sample weights, Co padded to 128
    # gb_ref:   (2, Cop)         row 0 = gamma, row 1 = beta (padded with 0)
    # o_ref:    (N, L, Cop)      lane-dense output (sliced back to Co outside)
    cols = cols_ref[...]
    w = w_ref[...]

    # grouped causal conv1d == batched im2col matmul (one MXU push per sample)
    y = jnp.einsum("nlc,nco->nlo", cols, w,
                   preferred_element_type=jnp.float32)        # (N, L, Cop)

    # InstanceNorm1d over the sequence axis, per (sample, channel), biased var
    mean = jnp.mean(y, axis=1, keepdims=True)                 # (N, 1, Cop)
    var = jnp.mean((y - mean) ** 2, axis=1, keepdims=True)    # (N, 1, Cop)
    gamma = gb_ref[0:1, :]                                    # (1, Cop)
    beta = gb_ref[1:2, :]                                     # (1, Cop)
    scale = gamma * lax.rsqrt(var + EPS)                      # gamma folded in
    yn = (y - mean) * scale + beta

    # Mish: y * tanh(softplus(y)), numerically stable softplus
    sp = jnp.maximum(yn, 0.0) + jnp.log1p(jnp.exp(-jnp.abs(yn)))
    o_ref[...] = (yn * jnp.tanh(sp)).astype(o_ref.dtype)


# ------------------------------ JAX glue / wrapper ---------------------------
def routed_weights(t, params):
    """Gate + softmax + expert routing -> per-sample conv kernels (N, Co, Ci, K)."""
    Co = params["gamma"].shape[0]
    g = t @ params["gate_w"].T + params["gate_b"]            # (N, 5*Co)
    g = g.reshape(t.shape[0], NUM_EXPERTS, Co)
    g = jax.nn.softmax(g, axis=1)                            # softmax over experts

    pool3 = jnp.full((3,), 1.0 / 3.0, jnp.float32)
    pool5 = jnp.full((5,), 1.0 / 5.0, jnp.float32)

    e5 = params["conv5"]                                              # (Co,Ci,5)
    e3 = jnp.pad(params["conv3"], ((0, 0), (0, 0), (2, 0)))           # left pad -> 5
    e1 = jnp.pad(params["conv1"], ((0, 0), (0, 0), (4, 0)))
    a3 = jnp.pad(params["avg3_conv"] * pool3, ((0, 0), (0, 0), (2, 0)))
    a5 = params["avg5_conv"] * pool5

    experts = jnp.stack([e5, e3, e1, a3, a5], axis=0)                 # (5,Co,Ci,K)
    # w[n,o,i,k] = sum_e g[n,e,o] * experts[e,o,i,k]
    return jnp.einsum("neo,eoik->noik", g, experts)


def mode_conv_forward(x, t, params):
    Nb, Ls, Ci = x.shape
    Co = params["gamma"].shape[0]
    K = KSIZE
    Cop = CO_PAD

    # routed weights -> (N, K*Ci, Co), then pad Co up to lane width
    w = routed_weights(t, params)                            # (N, Co, Ci, K)
    w2 = jnp.transpose(w, (0, 3, 2, 1)).reshape(Nb, K * Ci, Co)
    w2p = jnp.pad(w2, ((0, 0), (0, 0), (0, Cop - Co)))       # (N, K*Ci, Cop)

    # causal im2col columns: cols[n, l, k*Ci + i] = xp[n, l + k, i]
    xp = jnp.pad(x, ((0, 0), (K - 1, 0), (0, 0)))            # left zero pad
    cols = jnp.stack([xp[:, k:k + Ls, :] for k in range(K)], axis=2)
    cols = cols.reshape(Nb, Ls, K * Ci)                      # (N, L, K*Ci)

    gamma_p = jnp.pad(params["gamma"], (0, Cop - Co))
    beta_p = jnp.pad(params["beta"], (0, Cop - Co))
    gb = jnp.stack([gamma_p, beta_p], axis=0)                # (2, Cop)

    out = pl.pallas_call(
        mode_conv_kernel,
        out_shape=jax.ShapeDtypeStruct((Nb, Ls, Cop), jnp.float32),
        grid_spec=pltpu.PrefetchScalarGridSpec(
            num_scalar_prefetch=0,
            grid=(1,),                                       # single step: whole batch
            in_specs=[
                pl.BlockSpec((Nb, Ls, K * Ci), lambda i: (0, 0, 0)),
                pl.BlockSpec((Nb, K * Ci, Cop), lambda i: (0, 0, 0)),
                pl.BlockSpec((2, Cop), lambda i: (0, 0)),
            ],
            out_specs=pl.BlockSpec((Nb, Ls, Cop), lambda i: (0, 0, 0)),
        ),
        compiler_params=pltpu.CompilerParams(
            dimension_semantics=("arbitrary",)),
    )(cols, w2p, gb)

    return out[:, :, :Co].astype(x.dtype)                    # drop channel padding


# ------------------------------ reference (pure JAX) -------------------------
def mode_conv_reference(x, t, params):
    Nb, Ls, Ci = x.shape
    Co = params["gamma"].shape[0]
    K = KSIZE
    w = routed_weights(t, params)                            # (N, Co, Ci, K)
    xp = jnp.pad(x, ((0, 0), (K - 1, 0), (0, 0)))
    cols = jnp.stack([xp[:, k:k + Ls, :] for k in range(K)], axis=-1)  # (N,L,Ci,K)
    y = jnp.einsum("nlik,noik->nlo", cols, w)
    mean = y.mean(axis=1, keepdims=True)
    var = ((y - mean) ** 2).mean(axis=1, keepdims=True)
    yn = (y - mean) / jnp.sqrt(var + EPS)
    yn = yn * params["gamma"].reshape(1, 1, Co) + params["beta"].reshape(1, 1, Co)
    return yn * jnp.tanh(jax.nn.softplus(yn))


# ------------------------------ parameter init -------------------------------
def kaiming_uniform_fan_out(key, Co, Ci, K):
    # torch.nn.init.kaiming_uniform_(a=sqrt(5), mode='fan_out') on (Co, Ci, K)
    fan_out = Co * K
    gain = math.sqrt(2.0 / (1.0 + 5.0))
    bound = gain * math.sqrt(3.0 / fan_out)
    return jax.random.uniform(key, (Co, Ci, K), jnp.float32, -bound, bound)


def init_params(key):
    ks = jax.random.split(key, 7)
    gate_bound = 1.0 / math.sqrt(NUM_TASKS)
    return {
        "conv5": kaiming_uniform_fan_out(ks[0], OUT_CHAN, IN_CHAN, 5),
        "conv3": kaiming_uniform_fan_out(ks[1], OUT_CHAN, IN_CHAN, 3),
        "conv1": kaiming_uniform_fan_out(ks[2], OUT_CHAN, IN_CHAN, 1),
        "avg3_conv": kaiming_uniform_fan_out(ks[3], OUT_CHAN, IN_CHAN, 1),
        "avg5_conv": kaiming_uniform_fan_out(ks[4], OUT_CHAN, IN_CHAN, 1),
        "gate_w": jax.random.uniform(
            ks[5], (NUM_EXPERTS * OUT_CHAN, NUM_TASKS), jnp.float32,
            -gate_bound, gate_bound),
        "gate_b": jax.random.uniform(
            ks[6], (NUM_EXPERTS * OUT_CHAN,), jnp.float32,
            -gate_bound, gate_bound),
        "gamma": jnp.ones((OUT_CHAN,), jnp.float32),   # InstanceNorm1d affine=True
        "beta": jnp.zeros((OUT_CHAN,), jnp.float32),
    }


# ----------------------------------- main ------------------------------------
if __name__ == "__main__":
    key = jax.random.PRNGKey(0)
    kp, kx, kt = jax.random.split(key, 3)
    params = init_params(kp)

    x = jax.random.normal(kx, (N, L, IN_CHAN), jnp.float32)
    t = jax.random.normal(kt, (N, NUM_TASKS), jnp.float32)

    y = mode_conv_forward(x, t, params)
    y = jax.block_until_ready(y)

    y_ref = jax.block_until_ready(mode_conv_reference(x, t, params))
    assert y.shape == (N, L, OUT_CHAN)
    assert jnp.allclose(y, y_ref, rtol=1e-4, atol=1e-4), "mismatch vs JAX reference"

    print("KERNEL_OK")
</pallas_src>

<mosaic_0001>
module attributes {stable_mosaic.version = 11 : i64} {
  func.func @mode_conv_kernel(%arg0: i32, %arg1: memref<2x16x20xf32, #tpu.memory_space<vmem>>, %arg2: memref<2x20x128xf32, #tpu.memory_space<vmem>>, %arg3: memref<2x128xf32, #tpu.memory_space<vmem>>, %arg4: memref<2x16x128xf32, #tpu.memory_space<vmem>>) attributes {dimension_semantics = [#tpu.dimension_semantics<arbitrary>], iteration_bounds = array<i64: 1>, scalar_prefetch = 0 : i64, scratch_operands = 0 : i64, tpu.core_type = #tpu.core_type<tc>, window_params = [{pipeline_mode = #tpu.pipeline_mode<synchronous>, transform_indices = @transform_0, window_bounds = array<i64: 2, 16, 20>}, {pipeline_mode = #tpu.pipeline_mode<synchronous>, transform_indices = @transform_1, window_bounds = array<i64: 2, 20, 128>}, {pipeline_mode = #tpu.pipeline_mode<synchronous>, transform_indices = @transform_2, window_bounds = array<i64: 2, 128>}, {pipeline_mode = #tpu.pipeline_mode<synchronous>, transform_indices = @transform_3, window_bounds = array<i64: 2, 16, 128>}]} {
    %c0 = arith.constant 0 : index
    %c0_0 = arith.constant 0 : index
    %c0_1 = arith.constant 0 : index
    %0 = vector.load %arg1[%c0, %c0_0, %c0_1] : memref<2x16x20xf32, #tpu.memory_space<vmem>>, vector<2x16x20xf32>
    %c0_2 = arith.constant 0 : index
    %c0_3 = arith.constant 0 : index
    %c0_4 = arith.constant 0 : index
    %1 = vector.load %arg2[%c0_2, %c0_3, %c0_4] : memref<2x20x128xf32, #tpu.memory_space<vmem>>, vector<2x20x128xf32>
    "tpu.trace_start"() <{level = 10 : i32, message = "nlc,nco->nlo"}> : () -> ()
    %cst = arith.constant dense<0.000000e+00> : vector<2x16x128xf32>
    %2 = tpu.matmul %0, %1, %cst {dimension_numbers = #tpu.dot_dimension_numbers<[2], [1], [1], [2], [0, 0, 0, 1, 1, 2], [0], [0]>} : vector<2x16x20xf32>, vector<2x20x128xf32>, vector<2x16x128xf32> -> vector<2x16x128xf32>
    "tpu.trace_stop"() : () -> ()
    %cst_5 = arith.constant dense<0.000000e+00> : vector<2x128xf32>
    %3 = vector.multi_reduction <add>, %2, %cst_5 [1] : vector<2x16x128xf32> to vector<2x128xf32>
    %4 = vector.shape_cast %3 : vector<2x128xf32> to vector<2x1x128xf32>
    %cst_6 = arith.constant 1.600000e+01 : f32
    %5 = vector.broadcast %cst_6 : f32 to vector<2x1x128xf32>
    %6 = arith.divf %4, %5 : vector<2x1x128xf32>
    %7 = vector.broadcast %6 : vector<2x1x128xf32> to vector<2x16x128xf32>
    %8 = arith.subf %2, %7 : vector<2x16x128xf32>
    %9 = arith.mulf %8, %8 : vector<2x16x128xf32>
    %cst_7 = arith.constant dense<0.000000e+00> : vector<2x128xf32>
    %10 = vector.multi_reduction <add>, %9, %cst_7 [1] : vector<2x16x128xf32> to vector<2x128xf32>
    %11 = vector.shape_cast %10 : vector<2x128xf32> to vector<2x1x128xf32>
    %cst_8 = arith.constant 1.600000e+01 : f32
    %12 = vector.broadcast %cst_8 : f32 to vector<2x1x128xf32>
    %13 = arith.divf %11, %12 : vector<2x1x128xf32>
    %c0_9 = arith.constant 0 : index
    %c0_10 = arith.constant 0 : index
    %14 = vector.load %arg3[%c0_9, %c0_10] : memref<2x128xf32, #tpu.memory_space<vmem>>, vector<1x128xf32>
    %c1 = arith.constant 1 : index
    %c0_11 = arith.constant 0 : index
    %15 = vector.load %arg3[%c1, %c0_11] : memref<2x128xf32, #tpu.memory_space<vmem>>, vector<1x128xf32>
    %cst_12 = arith.constant 9.99999974E-6 : f32
    %16 = vector.broadcast %cst_12 : f32 to vector<2x1x128xf32>
    %17 = arith.addf %13, %16 : vector<2x1x128xf32>
    %18 = math.rsqrt %17 : vector<2x1x128xf32>
    %19 = vector.shape_cast %14 : vector<1x128xf32> to vector<1x1x128xf32>
    %20 = vector.broadcast %19 : vector<1x1x128xf32> to vector<2x1x128xf32>
    %21 = arith.mulf %20, %18 : vector<2x1x128xf32>
    %22 = vector.broadcast %6 : vector<2x1x128xf32> to vector<2x16x128xf32>
    %23 = arith.subf %2, %22 : vector<2x16x128xf32>
    %24 = vector.broadcast %21 : vector<2x1x128xf32> to vector<2x16x128xf32>
    %25 = arith.mulf %23, %24 : vector<2x16x128xf32>
    %26 = vector.shape_cast %15 : vector<1x128xf32> to vector<1x1x128xf32>
    %27 = vector.broadcast %26 : vector<1x1x128xf32> to vector<2x16x128xf32>
    %28 = arith.addf %25, %27 : vector<2x16x128xf32>
    %cst_13 = arith.constant 0.000000e+00 : f32
    %29 = vector.broadcast %cst_13 : f32 to vector<2x16x128xf32>
    %30 = arith.maximumf %28, %29 : vector<2x16x128xf32>
    %31 = math.absf %28 : vector<2x16x128xf32>
    %cst_14 = arith.constant 0.000000e+00 : f32
    %32 = vector.broadcast %cst_14 : f32 to vector<2x16x128xf32>
    %33 = arith.subf %32, %31 : vector<2x16x128xf32>
    %34 = math.exp %33 : vector<2x16x128xf32>
    %35 = math.log1p %34 : vector<2x16x128xf32>
    %36 = arith.addf %30, %35 : vector<2x16x128xf32>
    %37 = math.tanh %36 : vector<2x16x128xf32>
    %38 = arith.mulf %28, %37 : vector<2x16x128xf32>
    %c0_15 = arith.constant 0 : index
    %c0_16 = arith.constant 0 : index
    %c0_17 = arith.constant 0 : index
    %39 = vector.load %arg4[%c0_15, %c0_16, %c0_17] : memref<2x16x128xf32, #tpu.memory_space<vmem>>, vector<2x16x128xf32>
    tpu.vector_store %arg4[%c0_15, %c0_16, %c0_17], %38 {strides = array<i32>} : memref<2x16x128xf32, #tpu.memory_space<vmem>>, vector<2x16x128xf32>,
    return
  }
  func.func @transform_0(%arg0: i32) -> (i32, i32, i32) {
    %c0_i32 = arith.constant 0 : i32
    %c0_i32_0 = arith.constant 0 : i32
    %c0_i32_1 = arith.constant 0 : i32
    %c0_i32_2 = arith.constant 0 : i32
    return %c0_i32, %c0_i32_0, %c0_i32_1 : i32, i32, i32
  }
  func.func @transform_1(%arg0: i32) -> (i32, i32, i32) {
    %c0_i32 = arith.constant 0 : i32
    %c0_i32_0 = arith.constant 0 : i32
    %c0_i32_1 = arith.constant 0 : i32
    %c0_i32_2 = arith.constant 0 : i32
    return %c0_i32, %c0_i32_0, %c0_i32_1 : i32, i32, i32
  }
  func.func @transform_2(%arg0: i32) -> (i32, i32) {
    %c0_i32 = arith.constant 0 : i32
    %c0_i32_0 = arith.constant 0 : i32
    %c0_i32_1 = arith.constant 0 : i32
    return %c0_i32, %c0_i32_0 : i32, i32
  }
  func.func @transform_3(%arg0: i32) -> (i32, i32, i32) {
    %c0_i32 = arith.constant 0 : i32
    %c0_i32_0 = arith.constant 0 : i32
    %c0_i32_1 = arith.constant 0 : i32
    %c0_i32_2 = arith.constant 0 : i32
    return %c0_i32, %c0_i32_0, %c0_i32_1 : i32, i32, i32
  }
}

</mosaic_0001>

<llo_original>
// kernel: tpu_custom_call.1
$region0: #{tpu_custom_call.1}
  #allocation0 [shape = 'u32[]', space=smem, size = 0x4, offset = 0x4, fixed_abs, tag = 'smem constant byte address 0x4 - core index']
  #allocation1 [shape = 'u32[144,128]{1,0:T(1,128)}', space=vmem, size = 0x12000, scoped, tag = 'internal scratch']
  %s0 = inlined_call_operand.vmem [shape: f32[2,16,20], index: 0, kind: input, shape index: {}]
  %s1 = inlined_call_operand.vmem [shape: f32[2,20,128], index: 1, kind: input, shape index: {}]
  %s2 = inlined_call_operand.vmem [shape: f32[2,128], index: 2, kind: input, shape index: {}]
  %s3 = inlined_call_operand.hbm [shape: f32[2,16,128], index: 3, kind: output, shape index: {}]
  %s4 = sld [smem:[#allocation0]]
  $region22: #{tpu_custom_call.1} parent=0
    _
  %s6 = ssub.s32 1, %s4
  %s7 = scalar_select 0, %s6, %s4
  $region1: #{tpu_custom_call.1} parent=0
    #allocation2 [shape = 'u8[16384]{0}', space=vmem, size = 0x4000, scoped, tag = 'output window, operand 0, single buffered']
    #allocation3 [shape = 's32[1]{0}', space=sflag, size = 0x4, scoped, tag = 'scoped memory for tpu_custom_call.1']
    %8 = vsyncpa [#allocation3], 0
    // Predicated region
    $region2: #{tpu_custom_call.1} parent=1 // pred_check
      _
    $region3: #{tpu_custom_call.1} parent=1 // pred_check_branch
      %10 = sbr.rel (0) target = $region5
    $region4: #{tpu_custom_call.1} parent=1 // pred_region
      _
    $region5: #{tpu_custom_call.1} parent=1 // pred_fallthru
      _
    // Predicated region
    $region6: #{tpu_custom_call.1} parent=1 // pred_check
      _
    $region7: #{tpu_custom_call.1} parent=1 // pred_check_branch
      %12 = sbr.rel (0) target = $region9
    $region8: #{tpu_custom_call.1} parent=1 // pred_region
      _
    $region9: #{tpu_custom_call.1} parent=1 // pred_fallthru
      _
    // Predicated region
    $region10: #{tpu_custom_call.1} parent=1 // pred_check
      _
    $region11: #{tpu_custom_call.1} parent=1 // pred_check_branch
      %14 = sbr.rel (0) target = $region13
    $region12: #{tpu_custom_call.1} parent=1 // pred_region
      _
    $region13: #{tpu_custom_call.1} parent=1 // pred_fallthru
      _
    %v15 = vld [vmem:[%s0] sm:$0xff]
    %v16 = vld [vmem:[%s0 + $0x8] sm:$0xff]
    %v17 = vld [vmem:[%s0 + $0x10] sm:$0xff]
    %v18 = vld [vmem:[%s0 + $0x18] sm:$0xff]
    %v19 = vld [vmem:[%s1] sm:$0xff]
    %v20 = vld [vmem:[%s1 + $0x8] sm:$0xff]
    %v21 = vld [vmem:[%s1 + $0x10] sm:$0xf]
    %v22 = vld [vmem:[%s1 + $0x18] sm:$0xff]
    %v23 = vld [vmem:[%s1 + $0x20] sm:$0xff]
    %v24 = vld [vmem:[%s1 + $0x28] sm:$0xf]
    %vm25 = vcmask 162816
    %v27 = vsel %vm25, %v15, 0
    %v30 = vsel %vm25, %v16, 0
    %vm32 = vcmask 1043456
    %v34 = vsel %vm32, %v21, 0
    %36 = vmatprep.subr.mxu0 0.0
    %37 = vmatpush1.msra.mxu0 %v19
    %38 = vmatprep.subr.mxu0 0.0
    %39 = vmatpush1.msra.mxu0 %v20
    %40 = vmatprep.subr.mxu0 0.0
    %41 = vmatpush1.msra.mxu0 %v34
    %42 = vmatprep.subr.mxu0 0.0
    %43 = vmatpush1.msra.mxu0 0.0
    %44 = vmatprep.subr.mxu0 0.0
    %45 = vmatpush1.msra.mxu0 0.0
    %46 = vmatprep.subr.mxu0 0.0
    %47 = vmatpush1.msra.mxu0 0.0
    %48 = vmatprep.subr.mxu0 0.0
    %49 = vmatpush1.msra.mxu0 0.0
    %50 = vmatprep.subr.mxu0 0.0
    %51 = vmatpush1.msra.mxu0 0.0
    %52 = vmatprep.subr.mxu0 0.0
    %53 = vmatpush1.msra.mxu0 0.0
    %54 = vmatprep.subr.mxu0 0.0
    %55 = vmatpush1.msra.mxu0 0.0
    %56 = vmatprep.subr.mxu0 0.0
    %57 = vmatpush1.msra.mxu0 0.0
    %58 = vmatprep.subr.mxu0 0.0
    %59 = vmatpush1.msra.mxu0 0.0
    %60 = vmatprep.subr.mxu0 0.0
    %61 = vmatpush1.msra.mxu0 0.0
    %62 = vmatprep.subr.mxu0 0.0
    %63 = vmatpush1.msra.mxu0 0.0
    %64 = vmatprep.subr.mxu0 0.0
    %65 = vmatpush1.msra.mxu0 0.0
    %66 = vmatprep.subr.mxu0 0.0
    %67 = vmatpush1.msra.mxu0 0.0
    %68 = vmatprep.subr.mxu0 0.0
    %69 = vmatpush1.msra.mxu0 0.0
    %70 = vmatprep.subr.mxu0 0.0
    %71 = vmatpush1.msra.mxu0 0.0
    %72 = vmatprep.subr.mxu0 0.0
    %73 = vmatpush1.msra.mxu0 0.0
    %74 = vmatprep.subr.mxu0 0.0
    %75 = vmatpush1.msra.mxu0 0.0
    %76 = vmatprep.subr.mxu0 0.0
    %77 = vmatpush1.msra.mxu0 0.0
    %78 = vmatprep.subr.mxu0 0.0
    %79 = vmatpush1.msra.mxu0 0.0
    %80 = vmatprep.subr.mxu0 0.0
    %81 = vmatpush1.msra.mxu0 0.0
    %82 = vmatprep.subr.mxu0 0.0
    %83 = vmatpush1.msra.mxu0 0.0
    %84 = vmatprep.subr.mxu0 0.0
    %85 = vmatpush1.msra.mxu0 0.0
    %86 = vmatprep.subr.mxu0 0.0
    %87 = vmatpush1.msra.mxu0 0.0
    %88 = vmatprep.subr.mxu0 0.0
    %89 = vmatpush1.msra.mxu0 0.0
    %90 = vmatprep.subr.mxu0 0.0
    %91 = vmatpush1.msra.mxu0 0.0
    %92 = vmatprep.subr.mxu0 0.0
    %93 = vmatpush1.msra.mxu0 0.0
    %94 = vmatprep.subr.mxu0 0.0
    %95 = vmatpush1.msra.mxu0 0.0
    %96 = vmatprep.subr.mxu0 0.0
    %97 = vmatpush1.msra.mxu0 0.0
    %98 = vmatprep.subr.mxu0 0.0
    %99 = vmatpush1.msra.mxu0 0.0
    %100 = vmatprep.mubr.f32.mxu0 0.0
    %101 = vmatmul.mubr.f32.gmra.mrb[0].mxu0 %v27
    %v102 = vpop.f32.mrb[0].mxu0
    %v103 = vadd.f32 0.0, %v102
    %v104 = vpop.f32.mrb[0].mxu0
    %105 = vmatprep.mubr.f32.mxu0 0.0
    %106 = vmatmul.mubr.f32.gmra.mrb[0].mxu0 %v30
    %v107 = vpop.f32.mrb[0].mxu0
    %v108 = vadd.f32 0.0, %v107
    %v109 = vpop.f32.mrb[0].mxu0
    %110 = vdwg.mxu0
    %v112 = vsel %vm25, %v17, 0
    %v115 = vsel %vm25, %v18, 0
    %v118 = vsel %vm32, %v24, 0
    %120 = vmatprep.subr.mxu0 0.0
    %121 = vmatpush1.msra.mxu0 %v22
    %122 = vmatprep.subr.mxu0 0.0
    %123 = vmatpush1.msra.mxu0 %v23
    %124 = vmatprep.subr.mxu0 0.0
    %125 = vmatpush1.msra.mxu0 %v118
    %126 = vmatprep.subr.mxu0 0.0
    %127 = vmatpush1.msra.mxu0 0.0
    %128 = vmatprep.subr.mxu0 0.0
    %129 = vmatpush1.msra.mxu0 0.0
    %130 = vmatprep.subr.mxu0 0.0
    %131 = vmatpush1.msra.mxu0 0.0
    %132 = vmatprep.subr.mxu0 0.0
    %133 = vmatpush1.msra.mxu0 0.0
    %134 = vmatprep.subr.mxu0 0.0
    %135 = vmatpush1.msra.mxu0 0.0
    %136 = vmatprep.subr.mxu0 0.0
    %137 = vmatpush1.msra.mxu0 0.0
    %138 = vmatprep.subr.mxu0 0.0
    %139 = vmatpush1.msra.mxu0 0.0
    %140 = vmatprep.subr.mxu0 0.0
    %141 = vmatpush1.msra.mxu0 0.0
    %142 = vmatprep.subr.mxu0 0.0
    %143 = vmatpush1.msra.mxu0 0.0
    %144 = vmatprep.subr.mxu0 0.0
    %145 = vmatpush1.msra.mxu0 0.0
    %146 = vmatprep.subr.mxu0 0.0
    %147 = vmatpush1.msra.mxu0 0.0
    %148 = vmatprep.subr.mxu0 0.0
    %149 = vmatpush1.msra.mxu0 0.0
    %150 = vmatprep.subr.mxu0 0.0
    %151 = vmatpush1.msra.mxu0 0.0
    %152 = vmatprep.subr.mxu0 0.0
    %153 = vmatpush1.msra.mxu0 0.0
    %154 = vmatprep.subr.mxu0 0.0
    %155 = vmatpush1.msra.mxu0 0.0
    %156 = vmatprep.subr.mxu0 0.0
    %157 = vmatpush1.msra.mxu0 0.0
    %158 = vmatprep.subr.mxu0 0.0
    %159 = vmatpush1.msra.mxu0 0.0
    %160 = vmatprep.subr.mxu0 0.0
    %161 = vmatpush1.msra.mxu0 0.0
    %162 = vmatprep.subr.mxu0 0.0
    %163 = vmatpush1.msra.mxu0 0.0
    %164 = vmatprep.subr.mxu0 0.0
    %165 = vmatpush1.msra.mxu0 0.0
    %166 = vmatprep.subr.mxu0 0.0
    %167 = vmatpush1.msra.mxu0 0.0
    %168 = vmatprep.subr.mxu0 0.0
    %169 = vmatpush1.msra.mxu0 0.0
    %170 = vmatprep.subr.mxu0 0.0
    %171 = vmatpush1.msra.mxu0 0.0
    %172 = vmatprep.subr.mxu0 0.0
    %173 = vmatpush1.msra.mxu0 0.0
    %174 = vmatprep.subr.mxu0 0.0
    %175 = vmatpush1.msra.mxu0 0.0
    %176 = vmatprep.subr.mxu0 0.0
    %177 = vmatpush1.msra.mxu0 0.0
    %178 = vmatprep.subr.mxu0 0.0
    %179 = vmatpush1.msra.mxu0 0.0
    %180 = vmatprep.subr.mxu0 0.0
    %181 = vmatpush1.msra.mxu0 0.0
    %182 = vmatprep.subr.mxu0 0.0
    %183 = vmatpush1.msra.mxu0 0.0
    %184 = vmatprep.mubr.f32.mxu0 0.0
    %185 = vmatmul.mubr.f32.gmra.mrb[0].mxu0 %v112
    %v186 = vpop.f32.mrb[0].mxu0
    %v187 = vadd.f32 0.0, %v186
    %v188 = vpop.f32.mrb[0].mxu0
    %189 = vmatprep.mubr.f32.mxu0 0.0
    %190 = vmatmul.mubr.f32.gmra.mrb[0].mxu0 %v115
    %v191 = vpop.f32.mrb[0].mxu0
    %v192 = vadd.f32 0.0, %v191
    %v193 = vpop.f32.mrb[0].mxu0
    %194 = vdwg.mxu0
    %v195 = vadd.f32 %v103, %v108
    %v196 = vrot.slane %v195, 4
    %v197 = vadd.f32 %v195, %v196
    %v198 = vrot.slane %v197, 2
    %v199 = vadd.f32 %v197, %v198
    %v200 = vrot.slane %v199, 1
    %v201 = vadd.f32 %v199, %v200
    %v202 = vadd.f32 %v187, %v192
    %v203 = vrot.slane %v202, 4
    %v204 = vadd.f32 %v202, %v203
    %v205 = vrot.slane %v204, 2
    %v206 = vadd.f32 %v204, %v205
    %v207 = vrot.slane %v206, 1
    %v208 = vadd.f32 %v206, %v207
    %v209 = vrcp.pop 16.0
    %v210 = vmul.f32 %v201, %v209
    %v211 = vmul.f32 %v208, %v209
    %v212 = vsub.f32 %v103, %v210
    %v213 = vsub.f32 %v108, %v210
    %v214 = vsub.f32 %v187, %v211
    %v215 = vsub.f32 %v192, %v211
    %v216 = vmul.f32 %v212, %v212
    %v217 = vmul.f32 %v213, %v213
    %v218 = vmul.f32 %v214, %v214
    %v219 = vmul.f32 %v215, %v215
    %v220 = vadd.f32 %v216, %v217
    %v221 = vrot.slane %v220, 4
    %v222 = vadd.f32 %v220, %v221
    %v223 = vrot.slane %v222, 2
    %v224 = vadd.f32 %v222, %v223
    %v225 = vrot.slane %v224, 1
    %v226 = vadd.f32 %v224, %v225
    %v227 = vadd.f32 %v218, %v219
    %v228 = vrot.slane %v227, 4
    %v229 = vadd.f32 %v227, %v228
    %v230 = vrot.slane %v229, 2
    %v231 = vadd.f32 %v229, %v230
    %v232 = vrot.slane %v231, 1
    %v233 = vadd.f32 %v231, %v232
    %v234 = vmul.f32 %v226, %v209
    %v235 = vmul.f32 %v233, %v209
    %v236 = vld [vmem:[%s2] sm:$0x1]
    %v237 = vld [vmem:[%s2 + $0x1] sm:$0x1]
    %v238 = vadd.f32 %v234, 1e-05
    %v239 = vadd.f32 %v235, 1e-05
    %v240 = vrsqrt.pop %v238
    %v241 = vrsqrt.pop %v239
    %v242 = vmul.f32 %v236, %v240
    %v243 = vmul.f32 %v236, %v241
    %v244 = vlaneseq
    %v245 = vshrl.u32 %v244, 7
    %v246 = vsub.s32 0, %v245
    %v247 = vrot.slane %v242, %v246
    %v248 = vlaneseq
    %v249 = vshrl.u32 %v248, 7
    %v250 = vsub.s32 0, %v249
    %v251 = vrot.slane %v243, %v250
    %v252 = vmul.f32 %v212, %v247
    %v253 = vmul.f32 %v213, %v247
    %v254 = vmul.f32 %v214, %v251
    %v255 = vmul.f32 %v215, %v251
    %v256 = vlaneseq
    %v257 = vshrl.u32 %v256, 7
    %v258 = vsub.s32 0, %v257
    %v259 = vrot.slane %v237, %v258
    %v260 = vadd.f32 %v252, %v259
    %v261 = vadd.f32 %v253, %v259
    %v262 = vadd.f32 %v254, %v259
    %v263 = vadd.f32 %v255, %v259
    %v264 = vmax.f32 %v260, 0.0
    %v265 = vmax.f32 %v261, 0.0
    %v266 = vmax.f32 %v262, 0.0
    %v267 = vmax.f32 %v263, 0.0
    %v268 = vand.u32 2147483647, %v260
    %v269 = vand.u32 2147483647, %v261
    %v270 = vand.u32 2147483647, %v262
    %v271 = vand.u32 2147483647, %v263
    %v272 = vsub.f32 0.0, %v268
    %v273 = vsub.f32 0.0, %v269
    %v274 = vsub.f32 0.0, %v270
    %v275 = vsub.f32 0.0, %v271
    %v276 = vmul.f32 %v272, 1.442695
    %v277 = vpow.pop %v276
    %v278 = vmul.f32 %v273, 1.442695
    %v279 = vpow.pop %v278
    %v280 = vmul.f32 %v274, 1.442695
    %v281 = vpow.pop %v280
    %v282 = vmul.f32 %v275, 1.442695
    %v283 = vpow.pop %v282
    %v284 = vadd.f32 %v277, 1.0
    %v285 = vlog2.pop %v284
    %v286 = vmul.f32 %v285, 0.6931472
    %v287 = vmul.f32 -0.5, %v277
    %v288 = vadd.f32 %v287, 1.0
    %v289 = vmul.f32 %v288, %v277
    %v290 = vand.u32 2147483647, %v277
    %vm291 = vcmp.lt.f32.partialorder %v290, 0.0004427343
    %v292 = vsel %vm291, %v289, %v286
    %v293 = vadd.f32 %v279, 1.0
    %v294 = vlog2.pop %v293
    %v295 = vmul.f32 %v294, 0.6931472
    %v296 = vmul.f32 -0.5, %v279
    %v297 = vadd.f32 %v296, 1.0
    %v298 = vmul.f32 %v297, %v279
    %v299 = vand.u32 2147483647, %v279
    %vm300 = vcmp.lt.f32.partialorder %v299, 0.0004427343
    %v301 = vsel %vm300, %v298, %v295
    %v302 = vadd.f32 %v281, 1.0
    %v303 = vlog2.pop %v302
    %v304 = vmul.f32 %v303, 0.6931472
    %v305 = vmul.f32 -0.5, %v281
    %v306 = vadd.f32 %v305, 1.0
    %v307 = vmul.f32 %v306, %v281
    %v308 = vand.u32 2147483647, %v281
    %vm309 = vcmp.lt.f32.partialorder %v308, 0.0004427343
    %v310 = vsel %vm309, %v307, %v304
    %v311 = vadd.f32 %v283, 1.0
    %v312 = vlog2.pop %v311
    %v313 = vmul.f32 %v312, 0.6931472
    %v314 = vmul.f32 -0.5, %v283
    %v315 = vadd.f32 %v314, 1.0
    %v316 = vmul.f32 %v315, %v283
    %v317 = vand.u32 2147483647, %v283
    %vm318 = vcmp.lt.f32.partialorder %v317, 0.0004427343
    %v319 = vsel %vm318, %v316, %v313
    %v320 = vadd.f32 %v264, %v292
    %v321 = vadd.f32 %v265, %v301
    %v322 = vadd.f32 %v266, %v310
    %v323 = vadd.f32 %v267, %v319
    %v324 = vtanh.pop %v320
    %v325 = vtanh.pop %v321
    %v326 = vtanh.pop %v322
    %v327 = vtanh.pop %v323
    %v328 = vmul.f32 %v260, %v324
    %v329 = vmul.f32 %v261, %v325
    %v330 = vmul.f32 %v262, %v326
    %v331 = vmul.f32 %v263, %v327
    %332 = vst [vmem:[#allocation2] sm:$0xff] %v328
    %333 = vst [vmem:[#allocation2 + $0x8] sm:$0xff] %v329
    %334 = vst [vmem:[#allocation2 + $0x10] sm:$0xff] %v330
    %335 = vst [vmem:[#allocation2 + $0x18] sm:$0xff] %v331
    // Predicated region
    $region14: #{tpu_custom_call.1} parent=1 // pred_check
      _
    $region15: #{tpu_custom_call.1} parent=1 // pred_check_branch
      %337 = sbr.rel (0) target = $region17
    $region16: #{tpu_custom_call.1} parent=1 // pred_region
      %s339 = ssub.s32 512, 512
      %340 = vsyncadd [#allocation3], %s339
      %s341 = sshll.u32 [#allocation2], 4
      %s342 = int_to_ptr.vmem [resolvable:$true] %s341
      %347 = dma.vmem_to_hbm [thread:$0]  %s342, 512, %s3, [#allocation3], 128, 128, 8
    $region17: #{tpu_custom_call.1} parent=1 // pred_fallthru
      _
    // Predicated region
    $region18: #{tpu_custom_call.1} parent=1 // pred_check
      _
    $region19: #{tpu_custom_call.1} parent=1 // pred_check_branch
      %349 = sbr.rel (0) target = $region21
    $region20: #{tpu_custom_call.1} parent=1 // pred_region
      %350 = dma.done [#allocation3], 512
    $region21: #{tpu_custom_call.1} parent=1 // pred_fallthru
      _
    %351 = vsyncpa [#allocation3], 1

</llo_original>
